<compile_context>
chip_gen: v5e
topology: v5e:2x2
jax: 0.10.0
libtpu: 0.0.40
codegen_flags: <defaults>
</compile_context>

<pallas_src>
import functools

import jax
import jax.numpy as jnp
from jax import lax
from jax.experimental import pallas as pl
from jax.experimental.pallas import tpu as pltpu


def _round_up(x, m):
    return ((x + m - 1) // m) * m


def _lm_head_kernel(x_ref, w1_ref, b1_ref, gamma_ref, beta_ref,
                    w2_ref, b2_ref, o_ref, h_scratch):
    """Grid = (M tiles, V tiles); the V axis is innermost ("arbitrary")."""
    j = pl.program_id(1)

    @pl.when(j == 0)
    def _():
        # dense: x @ W1 + b1   (W1 stored pre-transposed as [H, H] = [in, out])
        h = jnp.dot(x_ref[...], w1_ref[...],
                    preferred_element_type=jnp.float32) + b1_ref[...]
        # exact GELU (torch.nn.GELU default): 0.5 * x * (1 + erf(x / sqrt(2)))
        h = 0.5 * h * (1.0 + lax.erf(h * 0.7071067811865476))
        # LayerNorm over the hidden dim (biased variance, eps = 1e-5)
        mu = jnp.mean(h, axis=-1, keepdims=True)
        var = jnp.mean(jnp.square(h - mu), axis=-1, keepdims=True)
        h = (h - mu) * lax.rsqrt(var + 1e-5)
        h = h * gamma_ref[...] + beta_ref[...]
        h_scratch[...] = h.astype(h_scratch.dtype)

    # decoder: h @ W2 + output_bias   (W2 stored as [H, V])
    o_ref[...] = (jnp.dot(h_scratch[...], w2_ref[...],
                          preferred_element_type=jnp.float32)
                  + b2_ref[...]).astype(o_ref.dtype)


def prepare_lm_head_params(w1, b1, gamma, beta, w2, b2,
                           compute_dtype=jnp.bfloat16):
    """One-time weight prep (do this at model init, NOT per forward call).

    Casts the matmul weights to the MXU compute dtype and reshapes the small
    fp32 vectors to [1, dim] rows so no per-call casts / reshapes hit HBM.
    Linear weights are expected pre-transposed as [in, out].
    """
    cdt = jnp.dtype(compute_dtype)
    H = w1.shape[0]
    V = w2.shape[1]
    return {
        "w1": jnp.asarray(w1, cdt),                              # [H, H]
        "b1": jnp.asarray(b1, jnp.float32).reshape(1, H),        # [1, H]
        "gamma": jnp.asarray(gamma, jnp.float32).reshape(1, H),  # [1, H]
        "beta": jnp.asarray(beta, jnp.float32).reshape(1, H),    # [1, H]
        "w2": jnp.asarray(w2, cdt),                              # [H, V]
        "b2": jnp.asarray(b2, jnp.float32).reshape(1, V),        # [1, V]
    }


def _vmem_budget_bytes():
    """Per-generation scoped-VMEM budget with DMA/compiler headroom."""
    cap = 64 << 20  # conservative fallback (v7x-sized physical VMEM)
    try:
        info = pltpu.get_tpu_info()
        cap = int(getattr(info, "vmem_capacity_bytes", cap)) or cap
    except Exception:
        pass
    # ~48 MiB on a 64 MiB chip (v7x), ~100 MiB on 128 MiB chips (v5e/v6e).
    return max(min(cap - (16 << 20), int(cap * 0.80)), 24 << 20)


def _tile_footprint(tm, tn, H, in_itemsize, out_itemsize):
    return (2 * tm * H * in_itemsize      # x tile (double-buffered)
            + 2 * H * H * in_itemsize     # W1 (constant block index)
            + 2 * H * tn * in_itemsize    # W2 vocab tile
            + 2 * tm * tn * out_itemsize  # logits tile
            + tm * H * in_itemsize        # h scratch
            + 16 * (H + tn) * 4)          # small fp32 params (sublane-padded)


@functools.partial(jax.jit, static_argnames=("tm", "tn", "out_dtype"))
def bert_lm_prediction_head(x, params, *, tm=1024, tn=1024, out_dtype=None):
    """BertLMPredictionHead forward.

    x:       [..., H] sequence output.
    params:  dict from prepare_lm_head_params (weights already in compute dtype).
    out_dtype: logits dtype (default x.dtype); pass jnp.bfloat16 to halve the
               output HBM write traffic if the consumer tolerates it.
    Returns [..., V].
    """
    w1, b1 = params["w1"], params["b1"]
    gamma, beta = params["gamma"], params["beta"]
    w2, b2 = params["w2"], params["b2"]
    cdt = jnp.dtype(w1.dtype)
    out_dt = jnp.dtype(out_dtype) if out_dtype is not None else jnp.dtype(x.dtype)

    *lead, H = x.shape
    V = w2.shape[1]
    x2 = x.reshape(-1, H).astype(cdt)
    M = x2.shape[0]

    # Tile sizes: clamp to the problem, keep (8, 128) alignment.  No wrapper
    # padding -- ragged edge blocks are fine because the only reduction axis
    # (H) is never tiled, so garbage in padded M rows / V lanes stays local to
    # rows/columns that are never written back.
    tm_eff = min(tm, _round_up(M, 8))
    tn_eff = min(tn, _round_up(V, 128))

    budget = _vmem_budget_bytes()
    slack = 8 << 20
    while (_tile_footprint(tm_eff, tn_eff, H, cdt.itemsize, out_dt.itemsize)
           + slack > budget) and tm_eff > 256:
        tm_eff = max(256, _round_up(tm_eff // 2, 8))
    while (_tile_footprint(tm_eff, tn_eff, H, cdt.itemsize, out_dt.itemsize)
           + slack > budget) and tn_eff > 512:
        tn_eff = max(512, _round_up(tn_eff // 2, 128))

    footprint = _tile_footprint(tm_eff, tn_eff, H, cdt.itemsize, out_dt.itemsize)
    vmem_limit = int(min(max(footprint + slack, 32 << 20), budget))

    grid = (pl.cdiv(M, tm_eff), pl.cdiv(V, tn_eff))

    out = pl.pallas_call(
        _lm_head_kernel,
        out_shape=jax.ShapeDtypeStruct((M, V), out_dt),
        grid_spec=pltpu.PrefetchScalarGridSpec(
            num_scalar_prefetch=0,
            grid=grid,
            in_specs=[
                pl.BlockSpec((tm_eff, H), lambda i, j: (i, 0)),   # x tile
                pl.BlockSpec((H, H), lambda i, j: (0, 0)),        # W1 (full)
                pl.BlockSpec((1, H), lambda i, j: (0, 0)),        # b1
                pl.BlockSpec((1, H), lambda i, j: (0, 0)),        # LN gamma
                pl.BlockSpec((1, H), lambda i, j: (0, 0)),        # LN beta
                pl.BlockSpec((H, tn_eff), lambda i, j: (0, j)),   # W2 vocab tile
                pl.BlockSpec((1, tn_eff), lambda i, j: (0, j)),   # output bias
            ],
            out_specs=pl.BlockSpec((tm_eff, tn_eff), lambda i, j: (i, j)),
            scratch_shapes=[pltpu.VMEM((tm_eff, H), cdt)],
        ),
        compiler_params=pltpu.CompilerParams(
            dimension_semantics=("parallel", "arbitrary"),
            vmem_limit_bytes=vmem_limit),
    )(x2, w1, b1, gamma, beta, w2, b2)

    return out.reshape(*lead, V)


def _reference(x2, w1, b1, gamma, beta, w2, b2, compute_dtype=jnp.bfloat16):
    """Reference with the same precision flow as the kernel
    (bf16 matmul operands, fp32 accumulation / GELU / LayerNorm)."""
    h = jnp.dot(x2.astype(compute_dtype), w1.astype(compute_dtype),
                preferred_element_type=jnp.float32) + b1
    h = 0.5 * h * (1.0 + lax.erf(h / jnp.sqrt(2.0)))
    mu = jnp.mean(h, axis=-1, keepdims=True)
    var = jnp.mean((h - mu) ** 2, axis=-1, keepdims=True)
    h = (h - mu) / jnp.sqrt(var + 1e-5) * gamma + beta
    return (jnp.dot(h.astype(compute_dtype), w2.astype(compute_dtype),
                    preferred_element_type=jnp.float32) + b2).astype(x2.dtype)


if __name__ == "__main__":
    # Small shapes chosen to also exercise the ragged-edge path:
    # M = 2*7 = 14 (tile rounds to 16), vocab = 500 (tile rounds to 512).
    batch, seq, hidden, vocab = 2, 7, 128, 500

    key = jax.random.PRNGKey(0)
    k_x, k_w1, k_b1, k_g, k_bt, k_w2 = jax.random.split(key, 6)

    # sequence_output: [batch, seq, hidden]
    x3 = jax.random.normal(k_x, (batch, seq, hidden), dtype=jnp.float32)

    # Deterministic synthetic parameters (shapes from nn.Linear / nn.LayerNorm).
    # Linear weights are stored pre-transposed as [in, out] for the kernel.
    w1 = jax.random.normal(k_w1, (hidden, hidden), dtype=jnp.float32) * 0.02
    b1 = jax.random.normal(k_b1, (hidden,), dtype=jnp.float32) * 0.02
    gamma = 1.0 + jax.random.normal(k_g, (hidden,), dtype=jnp.float32) * 0.02
    beta = jax.random.normal(k_bt, (hidden,), dtype=jnp.float32) * 0.02
    w2 = jax.random.normal(k_w2, (hidden, vocab), dtype=jnp.float32) * 0.02
    # output_bias initialized to zeros in the module, kept zero here.
    b2 = jnp.zeros((vocab,), dtype=jnp.float32)

    # One-time weight prep (model init), kept out of the per-call hot path.
    params = prepare_lm_head_params(w1, b1, gamma, beta, w2, b2)

    out = bert_lm_prediction_head(x3, params)
    out = jax.block_until_ready(out)
    assert out.shape == (batch, seq, vocab)

    ref = _reference(x3.reshape(-1, hidden), w1, b1, gamma, beta, w2,
                     b2).reshape(batch, seq, vocab)
    max_err = float(jnp.max(jnp.abs(out - ref)))
    assert jnp.allclose(out, ref, atol=1e-2, rtol=1e-2), (
        f"mismatch vs reference, max abs err = {max_err}")

    print("KERNEL_OK")
</pallas_src>

<mosaic_0001>
module attributes {stable_mosaic.version = 11 : i64} {
  func.func @_lm_head_kernel(%arg0: i32, %arg1: i32, %arg2: memref<16x128xbf16, #tpu.memory_space<vmem>>, %arg3: memref<128x128xbf16, #tpu.memory_space<vmem>>, %arg4: memref<1x128xf32, #tpu.memory_space<vmem>>, %arg5: memref<1x128xf32, #tpu.memory_space<vmem>>, %arg6: memref<1x128xf32, #tpu.memory_space<vmem>>, %arg7: memref<128x512xbf16, #tpu.memory_space<vmem>>, %arg8: memref<1x512xf32, #tpu.memory_space<vmem>>, %arg9: memref<16x512xf32, #tpu.memory_space<vmem>>, %arg10: memref<16x128xbf16, #tpu.memory_space<vmem>>) attributes {dimension_semantics = [#tpu.dimension_semantics<parallel>, #tpu.dimension_semantics<arbitrary>], iteration_bounds = array<i64: 1, 1>, scalar_prefetch = 0 : i64, scratch_operands = 1 : i64, tpu.core_type = #tpu.core_type<tc>, window_params = [{transform_indices = @transform_0, window_bounds = array<i64: 16, 128>}, {pipeline_mode = #tpu.pipeline_mode<synchronous>, transform_indices = @transform_1, window_bounds = array<i64: 128, 128>}, {pipeline_mode = #tpu.pipeline_mode<synchronous>, transform_indices = @transform_2, window_bounds = array<i64: 1, 128>}, {pipeline_mode = #tpu.pipeline_mode<synchronous>, transform_indices = @transform_3, window_bounds = array<i64: 1, 128>}, {pipeline_mode = #tpu.pipeline_mode<synchronous>, transform_indices = @transform_4, window_bounds = array<i64: 1, 128>}, {transform_indices = @transform_5, window_bounds = array<i64: 128, 512>}, {transform_indices = @transform_6, window_bounds = array<i64: 1, 512>}, {transform_indices = @transform_7, window_bounds = array<i64: 16, 512>}]} {
    %c0_i32 = arith.constant 0 : i32
    %0 = arith.cmpi eq, %arg1, %c0_i32 : i32
    %1 = arith.extui %0 : i1 to i32
    %c0_i32_0 = arith.constant 0 : i32
    %2 = arith.cmpi ne, %1, %c0_i32_0 : i32
    scf.if %2 {
      %c0_8 = arith.constant 0 : index
      %c0_9 = arith.constant 0 : index
      %10 = vector.load %arg2[%c0_8, %c0_9] : memref<16x128xbf16, #tpu.memory_space<vmem>>, vector<16x128xbf16>
      %c0_10 = arith.constant 0 : index
      %c0_11 = arith.constant 0 : index
      %11 = vector.load %arg3[%c0_10, %c0_11] : memref<128x128xbf16, #tpu.memory_space<vmem>>, vector<128x128xbf16>
      %cst_12 = arith.constant dense<0.000000e+00> : vector<16x128xf32>
      %12 = tpu.matmul %10, %11, %cst_12 {dimension_numbers = #tpu.dot_dimension_numbers<[1], [0], [0], [1], [0, 0, 1, 1], [], []>} : vector<16x128xbf16>, vector<128x128xbf16>, vector<16x128xf32> -> vector<16x128xf32>
      %c0_13 = arith.constant 0 : index
      %c0_14 = arith.constant 0 : index
      %13 = vector.load %arg4[%c0_13, %c0_14] : memref<1x128xf32, #tpu.memory_space<vmem>>, vector<1x128xf32>
      %14 = vector.broadcast %13 : vector<1x128xf32> to vector<16x128xf32>
      %15 = arith.addf %12, %14 : vector<16x128xf32>
      %cst_15 = arith.constant 5.000000e-01 : f32
      %16 = vector.broadcast %cst_15 : f32 to vector<16x128xf32>
      %17 = arith.mulf %16, %15 : vector<16x128xf32>
      %cst_16 = arith.constant 0.707106769 : f32
      %18 = vector.broadcast %cst_16 : f32 to vector<16x128xf32>
      %19 = arith.mulf %15, %18 : vector<16x128xf32>
      %20 = math.erf %19 : vector<16x128xf32>
      %cst_17 = arith.constant 1.000000e+00 : f32
      %21 = vector.broadcast %cst_17 : f32 to vector<16x128xf32>
      %22 = arith.addf %21, %20 : vector<16x128xf32>
      %23 = arith.mulf %17, %22 : vector<16x128xf32>
      %cst_18 = arith.constant dense<0.000000e+00> : vector<16xf32>
      %24 = vector.multi_reduction <add>, %23, %cst_18 [1] : vector<16x128xf32> to vector<16xf32>
      %25 = vector.shape_cast %24 : vector<16xf32> to vector<16x1xf32>
      %cst_19 = arith.constant 1.280000e+02 : f32
      %26 = vector.broadcast %cst_19 : f32 to vector<16x1xf32>
      %27 = arith.divf %25, %26 : vector<16x1xf32>
      %28 = vector.broadcast %27 : vector<16x1xf32> to vector<16x128xf32>
      %29 = arith.subf %23, %28 : vector<16x128xf32>
      %30 = arith.mulf %29, %29 : vector<16x128xf32>
      %cst_20 = arith.constant dense<0.000000e+00> : vector<16xf32>
      %31 = vector.multi_reduction <add>, %30, %cst_20 [1] : vector<16x128xf32> to vector<16xf32>
      %32 = vector.shape_cast %31 : vector<16xf32> to vector<16x1xf32>
      %cst_21 = arith.constant 1.280000e+02 : f32
      %33 = vector.broadcast %cst_21 : f32 to vector<16x1xf32>
      %34 = arith.divf %32, %33 : vector<16x1xf32>
      %35 = vector.broadcast %27 : vector<16x1xf32> to vector<16x128xf32>
      %36 = arith.subf %23, %35 : vector<16x128xf32>
      %cst_22 = arith.constant 9.99999974E-6 : f32
      %37 = vector.broadcast %cst_22 : f32 to vector<16x1xf32>
      %38 = arith.addf %34, %37 : vector<16x1xf32>
      %39 = math.rsqrt %38 : vector<16x1xf32>
      %40 = vector.broadcast %39 : vector<16x1xf32> to vector<16x128xf32>
      %41 = arith.mulf %36, %40 : vector<16x128xf32>
      %c0_23 = arith.constant 0 : index
      %c0_24 = arith.constant 0 : index
      %42 = vector.load %arg5[%c0_23, %c0_24] : memref<1x128xf32, #tpu.memory_space<vmem>>, vector<1x128xf32>
      %43 = vector.broadcast %42 : vector<1x128xf32> to vector<16x128xf32>
      %44 = arith.mulf %41, %43 : vector<16x128xf32>
      %c0_25 = arith.constant 0 : index
      %c0_26 = arith.constant 0 : index
      %45 = vector.load %arg6[%c0_25, %c0_26] : memref<1x128xf32, #tpu.memory_space<vmem>>, vector<1x128xf32>
      %46 = vector.broadcast %45 : vector<1x128xf32> to vector<16x128xf32>
      %47 = arith.addf %44, %46 : vector<16x128xf32>
      %48 = arith.truncf %47 : vector<16x128xf32> to vector<16x128xbf16>
      %c0_27 = arith.constant 0 : index
      %c0_28 = arith.constant 0 : index
      %49 = vector.load %arg10[%c0_27, %c0_28] : memref<16x128xbf16, #tpu.memory_space<vmem>>, vector<16x128xbf16>
      tpu.vector_store %arg10[%c0_27, %c0_28], %48 {strides = array<i32>} : memref<16x128xbf16, #tpu.memory_space<vmem>>, vector<16x128xbf16>,
    } else {
    }
    %c0 = arith.constant 0 : index
    %c0_1 = arith.constant 0 : index
    %3 = vector.load %arg10[%c0, %c0_1] : memref<16x128xbf16, #tpu.memory_space<vmem>>, vector<16x128xbf16>
    %c0_2 = arith.constant 0 : index
    %c0_3 = arith.constant 0 : index
    %4 = vector.load %arg7[%c0_2, %c0_3] : memref<128x512xbf16, #tpu.memory_space<vmem>>, vector<128x512xbf16>
    %cst = arith.constant dense<0.000000e+00> : vector<16x512xf32>
    %5 = tpu.matmul %3, %4, %cst {dimension_numbers = #tpu.dot_dimension_numbers<[1], [0], [0], [1], [0, 0, 1, 1], [], []>} : vector<16x128xbf16>, vector<128x512xbf16>, vector<16x512xf32> -> vector<16x512xf32>
    %c0_4 = arith.constant 0 : index
    %c0_5 = arith.constant 0 : index
    %6 = vector.load %arg8[%c0_4, %c0_5] : memref<1x512xf32, #tpu.memory_space<vmem>>, vector<1x512xf32>
    %7 = vector.broadcast %6 : vector<1x512xf32> to vector<16x512xf32>
    %8 = arith.addf %5, %7 : vector<16x512xf32>
    %c0_6 = arith.constant 0 : index
    %c0_7 = arith.constant 0 : index
    %9 = vector.load %arg9[%c0_6, %c0_7] : memref<16x512xf32, #tpu.memory_space<vmem>>, vector<16x512xf32>
    tpu.vector_store %arg9[%c0_6, %c0_7], %8 {strides = array<i32>} : memref<16x512xf32, #tpu.memory_space<vmem>>, vector<16x512xf32>,
    return
  }
  func.func @transform_0(%arg0: i32, %arg1: i32) -> (i32, i32) {
    %c0_i32 = arith.constant 0 : i32
    %c0_i32_0 = arith.constant 0 : i32
    return %arg0, %c0_i32 : i32, i32
  }
  func.func @transform_1(%arg0: i32, %arg1: i32) -> (i32, i32) {
    %c0_i32 = arith.constant 0 : i32
    %c0_i32_0 = arith.constant 0 : i32
    %c0_i32_1 = arith.constant 0 : i32
    return %c0_i32, %c0_i32_0 : i32, i32
  }
  func.func @transform_2(%arg0: i32, %arg1: i32) -> (i32, i32) {
    %c0_i32 = arith.constant 0 : i32
    %c0_i32_0 = arith.constant 0 : i32
    %c0_i32_1 = arith.constant 0 : i32
    return %c0_i32, %c0_i32_0 : i32, i32
  }
  func.func @transform_3(%arg0: i32, %arg1: i32) -> (i32, i32) {
    %c0_i32 = arith.constant 0 : i32
    %c0_i32_0 = arith.constant 0 : i32
    %c0_i32_1 = arith.constant 0 : i32
    return %c0_i32, %c0_i32_0 : i32, i32
  }
  func.func @transform_4(%arg0: i32, %arg1: i32) -> (i32, i32) {
    %c0_i32 = arith.constant 0 : i32
    %c0_i32_0 = arith.constant 0 : i32
    %c0_i32_1 = arith.constant 0 : i32
    return %c0_i32, %c0_i32_0 : i32, i32
  }
  func.func @transform_5(%arg0: i32, %arg1: i32) -> (i32, i32) {
    %c0_i32 = arith.constant 0 : i32
    %c0_i32_0 = arith.constant 0 : i32
    return %c0_i32, %arg1 : i32, i32
  }
  func.func @transform_6(%arg0: i32, %arg1: i32) -> (i32, i32) {
    %c0_i32 = arith.constant 0 : i32
    %c0_i32_0 = arith.constant 0 : i32
    return %c0_i32, %arg1 : i32, i32
  }
  func.func @transform_7(%arg0: i32, %arg1: i32) -> (i32, i32) {
    %c0_i32 = arith.constant 0 : i32
    return %arg0, %arg1 : i32, i32
  }
}

</mosaic_0001>

<llo_original>
// kernel: bert_lm_prediction_head.1
$region0: #{bert_lm_prediction_head.1}
  #allocation0 [shape = 'u32[]', space=smem, size = 0x4, offset = 0x4, fixed_abs, tag = 'smem constant byte address 0x4 - core index']
  #allocation1 [shape = 'u32[72,128]{1,0:T(1,128)}', space=vmem, size = 0x9000, scoped, tag = 'internal scratch']
  #allocation2 [shape = 'bf16[16,128]{1,0:T(8,128)(2,1)}', space=vmem, size = 0x1000, scoped, tag = 'scratch operand']
  %s0 = inlined_call_operand.vmem [shape: bf16[14,128], index: 0, kind: input, shape index: {}]
  %s1 = inlined_call_operand.vmem [shape: bf16[128,128], index: 1, kind: input, shape index: {}]
  %s2 = inlined_call_operand.vmem [shape: f32[1,128], index: 2, kind: input, shape index: {}]
  %s3 = inlined_call_operand.vmem [shape: f32[1,128], index: 3, kind: input, shape index: {}]
  %s4 = inlined_call_operand.vmem [shape: f32[1,128], index: 4, kind: input, shape index: {}]
  %s5 = inlined_call_operand.vmem [shape: bf16[128,500], index: 5, kind: input, shape index: {}]
  %s6 = inlined_call_operand.vmem [shape: f32[1,500], index: 6, kind: input, shape index: {}]
  %s7 = inlined_call_operand.vmem [shape: f32[14,500], index: 7, kind: output, shape index: {}]
  %s8 = sld [smem:[#allocation0]]
  $region42: #{bert_lm_prediction_head.1} parent=0
    _
  %s10 = ssub.s32 1, %s8
  %s11 = scalar_select 0, %s10, %s8
  // Predicated region
  $region2: #{bert_lm_prediction_head.1} parent=0 // pred_check
    _
  $region3: #{bert_lm_prediction_head.1} parent=0 // pred_check_branch
    %13 = sbr.rel (0) target = $region5
  $region4: #{bert_lm_prediction_head.1} parent=0 // pred_region
    _
  $region5: #{bert_lm_prediction_head.1} parent=0 // pred_fallthru
    _
  // Predicated region
  $region6: #{bert_lm_prediction_head.1} parent=0 // pred_check
    _
  $region7: #{bert_lm_prediction_head.1} parent=0 // pred_check_branch
    %15 = sbr.rel (0) target = $region9
  $region8: #{bert_lm_prediction_head.1} parent=0 // pred_region
    _
  $region9: #{bert_lm_prediction_head.1} parent=0 // pred_fallthru
    _
  // Predicated region
  $region10: #{bert_lm_prediction_head.1} parent=0 // pred_check
    _
  $region11: #{bert_lm_prediction_head.1} parent=0 // pred_check_branch
    %17 = sbr.rel (0) target = $region13
  $region12: #{bert_lm_prediction_head.1} parent=0 // pred_region
    _
  $region13: #{bert_lm_prediction_head.1} parent=0 // pred_fallthru
    _
  // Predicated region
  $region14: #{bert_lm_prediction_head.1} parent=0 // pred_check
    _
  $region15: #{bert_lm_prediction_head.1} parent=0 // pred_check_branch
    %19 = sbr.rel (0) target = $region17
  $region16: #{bert_lm_prediction_head.1} parent=0 // pred_region
    _
  $region17: #{bert_lm_prediction_head.1} parent=0 // pred_fallthru
    _
  // Predicated region
  $region18: #{bert_lm_prediction_head.1} parent=0 // pred_check
    _
  $region19: #{bert_lm_prediction_head.1} parent=0 // pred_check_branch
    %21 = sbr.rel (0) target = $region21
  $region20: #{bert_lm_prediction_head.1} parent=0 // pred_region
    _
  $region21: #{bert_lm_prediction_head.1} parent=0 // pred_fallthru
    _
  // Predicated region
  $region22: #{bert_lm_prediction_head.1} parent=0 // pred_check
    _
  $region23: #{bert_lm_prediction_head.1} parent=0 // pred_check_branch
    %23 = sbr.rel (0) target = $region25
  $region24: #{bert_lm_prediction_head.1} parent=0 // pred_region
    _
  $region25: #{bert_lm_prediction_head.1} parent=0 // pred_fallthru
    _
  // Predicated region
  $region26: #{bert_lm_prediction_head.1} parent=0 // pred_check
    _
  $region27: #{bert_lm_prediction_head.1} parent=0 // pred_check_branch
    %25 = sbr.rel (0) target = $region29
  $region28: #{bert_lm_prediction_head.1} parent=0 // pred_region
    _
  $region29: #{bert_lm_prediction_head.1} parent=0 // pred_fallthru
    _
  %p26 = scmp.eq.s32.totalorder 0, 0
  // Predicated region
  $region30: #{bert_lm_prediction_head.1} parent=0 // pred_check
    %p27 = pneg %p26
  $region31: #{bert_lm_prediction_head.1} parent=0 // pred_check_branch
    %29 = sbr.rel (%p27) target = $region33
  $region32: #{bert_lm_prediction_head.1} parent=0 // pred_region
    %v30 = vld [vmem:[%s0] sm:$0xf]
    %v31 = vld [vmem:[%s0 + $0x4] sm:$0xf]
    %v32 = vld [vmem:[%s1] sm:$0xf]
    %v33 = vld [vmem:[%s1 + $0x4] sm:$0xf]
    %v34 = vld [vmem:[%s1 + $0x8] sm:$0xf]
    %v35 = vld [vmem:[%s1 + $0xc] sm:$0xf]
    %v36 = vld [vmem:[%s1 + $0x10] sm:$0xf]
    %v37 = vld [vmem:[%s1 + $0x14] sm:$0xf]
    %v38 = vld [vmem:[%s1 + $0x18] sm:$0xf]
    %v39 = vld [vmem:[%s1 + $0x1c] sm:$0xf]
    %v40 = vld [vmem:[%s1 + $0x20] sm:$0xf]
    %v41 = vld [vmem:[%s1 + $0x24] sm:$0xf]
    %v42 = vld [vmem:[%s1 + $0x28] sm:$0xf]
    %v43 = vld [vmem:[%s1 + $0x2c] sm:$0xf]
    %v44 = vld [vmem:[%s1 + $0x30] sm:$0xf]
    %v45 = vld [vmem:[%s1 + $0x34] sm:$0xf]
    %v46 = vld [vmem:[%s1 + $0x38] sm:$0xf]
    %v47 = vld [vmem:[%s1 + $0x3c] sm:$0xf]
    %v48 = vld [vmem:[%s2] sm:$0x1]
    %v50 = vperm.slane %v48, 0
    %v54 = vunpack.c.l.b16 %v30
    %v55 = vunpack.c.l.b16 %v31
    %v56 = vpack.c.b16 %v55, %v54
    %v74 = vunpack.c.l.b16 %v32
    %v75 = vunpack.c.l.b16 %v33
    %v76 = vunpack.c.l.b16 %v34
    %v77 = vunpack.c.l.b16 %v35
    %v78 = vunpack.c.l.b16 %v36
    %v79 = vunpack.c.l.b16 %v37
    %v80 = vunpack.c.l.b16 %v38
    %v81 = vunpack.c.l.b16 %v39
    %v82 = vunpack.c.l.b16 %v40
    %v83 = vunpack.c.l.b16 %v41
    %v84 = vunpack.c.l.b16 %v42
    %v85 = vunpack.c.l.b16 %v43
    %v86 = vunpack.c.l.b16 %v44
    %v87 = vunpack.c.l.b16 %v45
    %v88 = vunpack.c.l.b16 %v46
    %v89 = vunpack.c.l.b16 %v47
    %v90 = vpack.c.b16 %v75, %v74
    %v91 = vpack.c.b16 %v77, %v76
    %v92 = vpack.c.b16 %v79, %v78
    %v93 = vpack.c.b16 %v81, %v80
    %v94 = vpack.c.b16 %v83, %v82
    %v95 = vpack.c.b16 %v85, %v84
    %v96 = vpack.c.b16 %v87, %v86
    %v97 = vpack.c.b16 %v89, %v88
    %106 = vmatpush.bf16.msra.mxu0 %v97
    %107 = vmatpush.bf16.msra.mxu0 %v96
    %108 = vmatpush.bf16.msra.mxu0 %v95
    %109 = vmatpush.bf16.msra.mxu0 %v94
    %110 = vmatpush.bf16.msra.mxu0 %v93
    %111 = vmatpush.bf16.msra.mxu0 %v92
    %112 = vmatpush.bf16.msra.mxu0 %v91
    %113 = vmatpush.bf16.msra.mxu0 %v90
    %114 = vmatmul.bf16.gmra.mxu0 %v56
    %v115 = vpop.f32.mrf.mxu0
    %v116 = vadd.f32 %v50, %v115
    %v117 = vpop.f32.mrf.mxu0
    %v118 = vadd.f32 %v50, %v117
    %119 = vdwg.mxu0
    %v120 = vmul.f32 %v116, 0.5
    %v121 = vmul.f32 %v118, 0.5
    %v122 = vmul.f32 %v116, 0.70710677
    %v123 = vmul.f32 %v118, 0.70710677
    %v124 = vmul.f32 %v122, %v122
    %v125 = vmin.f32 16.0, %v124
    %v126 = vmul.f32 %v125, 2.1237322e-06
    %v127 = vadd.f32 %v126, 0.00028619796
    %v128 = vmul.f32 %v125, %v127
    %v129 = vadd.f32 %v128, 0.0036580483
    %v130 = vmul.f32 %v125, %v129
    %v131 = vadd.f32 %v130, 0.05243302
    %v132 = vmul.f32 %v125, %v131
    %v133 = vadd.f32 %v132, 0.18741608
    %v134 = vmul.f32 %v125, %v133
    %v135 = vadd.f32 %v134, 1.1283791
    %v136 = vmul.f32 %v122, %v135
    %v137 = vmul.f32 %v125, 3.8918573e-05
    %v138 = vadd.f32 %v137, 0.001143296
    %v139 = vmul.f32 %v125, %v138
    %v140 = vadd.f32 %v139, 0.014752088
    %v141 = vmul.f32 %v125, %v140
    %v142 = vadd.f32 %v141, 0.112945676
    %v143 = vmul.f32 %v125, %v142
    %v144 = vadd.f32 %v143, 0.4994258
    %v145 = vmul.f32 %v125, %v144
    %v146 = vadd.f32 %v145, 1.0
    %v147 = vrcp.pop %v146
    %v148 = vmul.f32 %v146, %v147
    %v149 = vsub.f32 1.0, %v148
    %v150 = vmul.f32 %v147, %v149
    %v151 = vadd.f32 %v147, %v150
    %vm152 = vweird.f32 %v146
    %vm153 = vweird.f32 %v147
    %vm154 = vmor %vm152, %vm153
    %v155 = vsel %vm154, %v147, %v151
    %v156 = vand.u32 2147483647, %v146
    %vm157 = vcmp.eq.f32.partialorder %v156, 8.507059e+37
    %v158 = vand.u32 %v146, 2147483648
    %v159 = vor.u32 1.1754944e-38, %v158
    %v160 = vsel %vm157, %v159, %v155
    %v161 = vmul.f32 %v136, %v160
    %v162 = vmin.f32 %v161, 1.0
    %v163 = vmax.f32 %v162, -1.0
    %v164 = vmul.f32 %v123, %v123
    %v165 = vmin.f32 16.0, %v164
    %v166 = vmul.f32 %v165, 2.1237322e-06
    %v167 = vadd.f32 %v166, 0.00028619796
    %v168 = vmul.f32 %v165, %v167
    %v169 = vadd.f32 %v168, 0.0036580483
    %v170 = vmul.f32 %v165, %v169
    %v171 = vadd.f32 %v170, 0.05243302
    %v172 = vmul.f32 %v165, %v171
    %v173 = vadd.f32 %v172, 0.18741608
    %v174 = vmul.f32 %v165, %v173
    %v175 = vadd.f32 %v174, 1.1283791
    %v176 = vmul.f32 %v123, %v175
    %v177 = vmul.f32 %v165, 3.8918573e-05
    %v178 = vadd.f32 %v177, 0.001143296
    %v179 = vmul.f32 %v165, %v178
    %v180 = vadd.f32 %v179, 0.014752088
    %v181 = vmul.f32 %v165, %v180
    %v182 = vadd.f32 %v181, 0.112945676
    %v183 = vmul.f32 %v165, %v182
    %v184 = vadd.f32 %v183, 0.4994258
    %v185 = vmul.f32 %v165, %v184
    %v186 = vadd.f32 %v185, 1.0
    %v187 = vrcp.pop %v186
    %v188 = vmul.f32 %v186, %v187
    %v189 = vsub.f32 1.0, %v188
    %v190 = vmul.f32 %v187, %v189
    %v191 = vadd.f32 %v187, %v190
    %vm192 = vweird.f32 %v186
    %vm193 = vweird.f32 %v187
    %vm194 = vmor %vm192, %vm193
    %v195 = vsel %vm194, %v187, %v191
    %v196 = vand.u32 2147483647, %v186
    %vm197 = vcmp.eq.f32.partialorder %v196, 8.507059e+37
    %v198 = vand.u32 %v186, 2147483648
    %v199 = vor.u32 1.1754944e-38, %v198
    %v200 = vsel %vm197, %v199, %v195
    %v201 = vmul.f32 %v176, %v200
    %v202 = vmin.f32 %v201, 1.0
    %v203 = vmax.f32 %v202, -1.0
    %v204 = vadd.f32 %v163, 1.0
    %v205 = vadd.f32 %v203, 1.0
    %v206 = vmul.f32 %v120, %v204
    %v207 = vmul.f32 %v121, %v205
    %208 = vadd.xlane.f32.xlu0 %v206
    %v209 = vpop.xlane.xlu0 %208
    %210 = vadd.xlane.f32.xlu0 %v207
    %v211 = vpop.xlane.xlu0 %210
    %v212 = vrcp.pop 128.0
    %v213 = vmul.f32 128.0, %v212
    %v214 = vsub.f32 1.0, %v213
    %v215 = vmul.f32 %v212, %v214
    %v216 = vadd.f32 %v212, %v215
    %vm217 = vweird.f32 %v212
    %v218 = vsel %vm217, %v212, %v216
    %v219 = vmul.f32 %v209, %v218
    %v220 = vmul.f32 %v211, %v218
    %v221 = vsub.f32 %v206, %v219
    %v222 = vsub.f32 %v207, %v220
    %v223 = vmul.f32 %v221, %v221
    %v224 = vmul.f32 %v222, %v222
    %225 = vadd.xlane.f32.xlu0 %v223
    %v226 = vpop.xlane.xlu0 %225
    %227 = vadd.xlane.f32.xlu0 %v224
    %v228 = vpop.xlane.xlu0 %227
    %v229 = vmul.f32 %v226, %v218
    %v230 = vmul.f32 %v228, %v218
    %v231 = vadd.f32 %v229, 1e-05
    %v232 = vadd.f32 %v230, 1e-05
    %v233 = vrsqrt.pop %v231
    %v234 = vmul.f32 %v233, %v231
    %v235 = vmul.f32 %v234, %v233
    %v236 = vmul.f32 0.5, %v235
    %v237 = vsub.f32 1.5, %v236
    %v238 = vmul.f32 %v233, %v237
    %vm239 = vweird.f32 %v231
    %vm240 = vweird.f32 %v233
    %vm241 = vmor %vm239, %vm240
    %v242 = vsel %vm241, %v233, %v238
    %v243 = vrsqrt.pop %v232
    %v244 = vmul.f32 %v243, %v232
    %v245 = vmul.f32 %v244, %v243
    %v246 = vmul.f32 0.5, %v245
    %v247 = vsub.f32 1.5, %v246
    %v248 = vmul.f32 %v243, %v247
    %vm249 = vweird.f32 %v232
    %vm250 = vweird.f32 %v243
    %vm251 = vmor %vm249, %vm250
    %v252 = vsel %vm251, %v243, %v248
    %v253 = vmul.f32 %v221, %v242
    %v254 = vmul.f32 %v222, %v252
    %v255 = vld [vmem:[%s3] sm:$0x1]
    %v257 = vperm.slane %v255, 0
    %v259 = vmul.f32 %v253, %v257
    %v260 = vmul.f32 %v254, %v257
    %v261 = vld [vmem:[%s4] sm:$0x1]
    %v263 = vperm.slane %v261, 0
    %v265 = vadd.f32 %v259, %v263
    %v266 = vadd.f32 %v260, %v263
    %v267 = vpack.c.bf16 %v265, %v265
    %v268 = vpack.c.bf16 %v266, %v266
    %269 = vst [vmem:[#allocation2] sm:$0xf] %v267
    %270 = vst [vmem:[#allocation2 + $0x4] sm:$0xf] %v268
  $region33: #{bert_lm_prediction_head.1} parent=0 // pred_fallthru
    _
  %v271 = vld [vmem:[#allocation2] sm:$0xf]
  %v272 = vld [vmem:[#allocation2 + $0x4] sm:$0xf]
  %v273 = vld [vmem:[%s5] sm:$0xff]
  %v274 = vld [vmem:[%s5 + $0x8] sm:$0xff]
  %v275 = vld [vmem:[%s5 + $0x10] sm:$0xff]
  %v276 = vld [vmem:[%s5 + $0x18] sm:$0xff]
  %v277 = vld [vmem:[%s5 + $0x20] sm:$0xff]
  %v278 = vld [vmem:[%s5 + $0x28] sm:$0xff]
  %v279 = vld [vmem:[%s5 + $0x30] sm:$0xff]
  %v280 = vld [vmem:[%s5 + $0x38] sm:$0xff]
  %v281 = vld [vmem:[%s5 + $0x40] sm:$0xff]
  %v282 = vld [vmem:[%s5 + $0x48] sm:$0xff]
  %v283 = vld [vmem:[%s5 + $0x50] sm:$0xff]
  %v284 = vld [vmem:[%s5 + $0x58] sm:$0xff]
  %v285 = vld [vmem:[%s5 + $0x60] sm:$0xff]
  %v286 = vld [vmem:[%s5 + $0x68] sm:$0xff]
  %v287 = vld [vmem:[%s5 + $0x70] sm:$0xff]
  %v288 = vld [vmem:[%s5 + $0x78] sm:$0xff]
  %v289 = vld [vmem:[%s5 + $0x80] sm:$0xff]
  %v290 = vld [vmem:[%s5 + $0x88] sm:$0xff]
  %v291 = vld [vmem:[%s5 + $0x90] sm:$0xff]
  %v292 = vld [vmem:[%s5 + $0x98] sm:$0xff]
  %v293 = vld [vmem:[%s5 + $0xa0] sm:$0xff]
  %v294 = vld [vmem:[%s5 + $0xa8] sm:$0xff]
  %v295 = vld [vmem:[%s5 + $0xb0] sm:$0xff]
  %v296 = vld [vmem:[%s5 + $0xb8] sm:$0xff]
  %v297 = vld [vmem:[%s5 + $0xc0] sm:$0xff]
  %v298 = vld [vmem:[%s5 + $0xc8] sm:$0xff]
  %v299 = vld [vmem:[%s5 + $0xd0] sm:$0xff]
  %v300 = vld [vmem:[%s5 + $0xd8] sm:$0xff]
  %v301 = vld [vmem:[%s5 + $0xe0] sm:$0xff]
  %v302 = vld [vmem:[%s5 + $0xe8] sm:$0xff]
  %v303 = vld [vmem:[%s5 + $0xf0] sm:$0xff]
  %v304 = vld [vmem:[%s5 + $0xf8] sm:$0xff]
  %v305 = vld [vmem:[%s6] sm:$0xf]
  %v307 = vperm.slane %v305, 0
  %v308 = vperm.slane %v305, 1
  %v309 = vperm.slane %v305, 2
  %v310 = vperm.slane %v305, 3
  %v317 = vunpack.c.l.b16 %v271
  %v318 = vunpack.c.l.b16 %v272
  %v319 = vpack.c.b16 %v318, %v317
  %v353 = vunpack.c.l.b16 %v273
  %v354 = vunpack.c.h.b16 %v273
  %v355 = vunpack.c.l.b16 %v274
  %v356 = vunpack.c.h.b16 %v274
  %v357 = vunpack.c.l.b16 %v275
  %v358 = vunpack.c.h.b16 %v275
  %v359 = vunpack.c.l.b16 %v276
  %v360 = vunpack.c.h.b16 %v276
  %v361 = vunpack.c.l.b16 %v277
  %v362 = vunpack.c.h.b16 %v277
  %v363 = vunpack.c.l.b16 %v278
  %v364 = vunpack.c.h.b16 %v278
  %v365 = vunpack.c.l.b16 %v279
  %v366 = vunpack.c.h.b16 %v279
  %v367 = vunpack.c.l.b16 %v280
  %v368 = vunpack.c.h.b16 %v280
  %v369 = vunpack.c.l.b16 %v281
  %v370 = vunpack.c.h.b16 %v281
  %v371 = vunpack.c.l.b16 %v282
  %v372 = vunpack.c.h.b16 %v282
  %v373 = vunpack.c.l.b16 %v283
  %v374 = vunpack.c.h.b16 %v283
  %v375 = vunpack.c.l.b16 %v284
  %v376 = vunpack.c.h.b16 %v284
  %v377 = vunpack.c.l.b16 %v285
  %v378 = vunpack.c.h.b16 %v285
  %v379 = vunpack.c.l.b16 %v286
  %v380 = vunpack.c.h.b16 %v286
  %v381 = vunpack.c.l.b16 %v287
  %v382 = vunpack.c.h.b16 %v287
  %v383 = vunpack.c.l.b16 %v288
  %v384 = vunpack.c.h.b16 %v288
  %v385 = vunpack.c.l.b16 %v289
  %v386 = vunpack.c.h.b16 %v289
  %v387 = vunpack.c.l.b16 %v290
  %v388 = vunpack.c.h.b16 %v290
  %v389 = vunpack.c.l.b16 %v291
  %v390 = vunpack.c.h.b16 %v291
  %v391 = vunpack.c.l.b16 %v292
  %v392 = vunpack.c.h.b16 %v292
  %v393 = vunpack.c.l.b16 %v293
  %v394 = vunpack.c.h.b16 %v293
  %v395 = vunpack.c.l.b16 %v294
  %v396 = vunpack.c.h.b16 %v294
  %v397 = vunpack.c.l.b16 %v295
  %v398 = vunpack.c.h.b16 %v295
  %v399 = vunpack.c.l.b16 %v296
  %v400 = vunpack.c.h.b16 %v296
  %v401 = vunpack.c.l.b16 %v297
  %v402 = vunpack.c.h.b16 %v297
  %v403 = vunpack.c.l.b16 %v298
  %v404 = vunpack.c.h.b16 %v298
  %v405 = vunpack.c.l.b16 %v299
  %v406 = vunpack.c.h.b16 %v299
  %v407 = vunpack.c.l.b16 %v300
  %v408 = vunpack.c.h.b16 %v300
  %v409 = vunpack.c.l.b16 %v301
  %v410 = vunpack.c.h.b16 %v301
  %v411 = vunpack.c.l.b16 %v302
  %v412 = vunpack.c.h.b16 %v302
  %v413 = vunpack.c.l.b16 %v303
  %v414 = vunpack.c.h.b16 %v303
  %v415 = vunpack.c.l.b16 %v304
  %v416 = vunpack.c.h.b16 %v304
  %v417 = vpack.c.b16 %v357, %v353
  %v418 = vpack.c.b16 %v358, %v354
  %v419 = vpack.c.b16 %v359, %v355
  %v420 = vpack.c.b16 %v360, %v356
  %v421 = vpack.c.b16 %v365, %v361
  %v422 = vpack.c.b16 %v366, %v362
  %v423 = vpack.c.b16 %v367, %v363
  %v424 = vpack.c.b16 %v368, %v364
  %v425 = vpack.c.b16 %v373, %v369
  %v426 = vpack.c.b16 %v374, %v370
  %v427 = vpack.c.b16 %v375, %v371
  %v428 = vpack.c.b16 %v376, %v372
  %v429 = vpack.c.b16 %v381, %v377
  %v430 = vpack.c.b16 %v382, %v378
  %v431 = vpack.c.b16 %v383, %v379
  %v432 = vpack.c.b16 %v384, %v380
  %v433 = vpack.c.b16 %v389, %v385
  %v434 = vpack.c.b16 %v390, %v386
  %v435 = vpack.c.b16 %v391, %v387
  %v436 = vpack.c.b16 %v392, %v388
  %v437 = vpack.c.b16 %v397, %v393
  %v438 = vpack.c.b16 %v398, %v394
  %v439 = vpack.c.b16 %v399, %v395
  %v440 = vpack.c.b16 %v400, %v396
  %v441 = vpack.c.b16 %v405, %v401
  %v442 = vpack.c.b16 %v406, %v402
  %v443 = vpack.c.b16 %v407, %v403
  %v444 = vpack.c.b16 %v408, %v404
  %v445 = vpack.c.b16 %v413, %v409
  %v446 = vpack.c.b16 %v414, %v410
  %v447 = vpack.c.b16 %v415, %v411
  %v448 = vpack.c.b16 %v416, %v412
  %481 = vmatpush.bf16.msra.mxu0 %v445
  %482 = vmatpush.bf16.msra.mxu0 %v441
  %483 = vmatpush.bf16.msra.mxu0 %v437
  %484 = vmatpush.bf16.msra.mxu0 %v433
  %485 = vmatpush.bf16.msra.mxu0 %v429
  %486 = vmatpush.bf16.msra.mxu0 %v425
  %487 = vmatpush.bf16.msra.mxu0 %v421
  %488 = vmatpush.bf16.msra.mxu0 %v417
  %489 = vmatmul.bf16.gmra.mxu0 %v319
  %v490 = vpop.f32.mrf.mxu0
  %v491 = vadd.f32 %v307, %v490
  %v492 = vpop.f32.mrf.mxu0
  %v493 = vadd.f32 %v307, %v492
  %494 = vdwg.mxu0
  %495 = vmatpush.bf16.msra.mxu0 %v446
  %496 = vmatpush.bf16.msra.mxu0 %v442
  %497 = vmatpush.bf16.msra.mxu0 %v438
  %498 = vmatpush.bf16.msra.mxu0 %v434
  %499 = vmatpush.bf16.msra.mxu0 %v430
  %500 = vmatpush.bf16.msra.mxu0 %v426
  %501 = vmatpush.bf16.msra.mxu0 %v422
  %502 = vmatpush.bf16.msra.mxu0 %v418
  %503 = vmatmul.bf16.gmra.mxu0 %v319
  %v504 = vpop.f32.mrf.mxu0
  %v505 = vadd.f32 %v308, %v504
  %v506 = vpop.f32.mrf.mxu0
  %v507 = vadd.f32 %v308, %v506
  %508 = vdwg.mxu0
  %509 = vmatpush.bf16.msra.mxu0 %v447
  %510 = vmatpush.bf16.msra.mxu0 %v443
  %511 = vmatpush.bf16.msra.mxu0 %v439
  %512 = vmatpush.bf16.msra.mxu0 %v435
  %513 = vmatpush.bf16.msra.mxu0 %v431
  %514 = vmatpush.bf16.msra.mxu0 %v427
  %515 = vmatpush.bf16.msra.mxu0 %v423
  %516 = vmatpush.bf16.msra.mxu0 %v419
  %517 = vmatmul.bf16.gmra.mxu0 %v319
  %v518 = vpop.f32.mrf.mxu0
  %v519 = vadd.f32 %v309, %v518
  %v520 = vpop.f32.mrf.mxu0
  %v521 = vadd.f32 %v309, %v520
  %522 = vdwg.mxu0
  %523 = vmatpush.bf16.msra.mxu0 %v448
  %524 = vmatpush.bf16.msra.mxu0 %v444
  %525 = vmatpush.bf16.msra.mxu0 %v440
  %526 = vmatpush.bf16.msra.mxu0 %v436
  %527 = vmatpush.bf16.msra.mxu0 %v432
  %528 = vmatpush.bf16.msra.mxu0 %v428
  %529 = vmatpush.bf16.msra.mxu0 %v424
  %530 = vmatpush.bf16.msra.mxu0 %v420
  %531 = vmatmul.bf16.gmra.mxu0 %v319
  %v532 = vpop.f32.mrf.mxu0
  %v533 = vadd.f32 %v310, %v532
  %v534 = vpop.f32.mrf.mxu0
  %v535 = vadd.f32 %v310, %v534
  %536 = vdwg.mxu0
  %537 = vst [vmem:[%s7] sm:$0xff] %v491
  %538 = vst [vmem:[%s7 + $0x8] sm:$0xff] %v505
  %539 = vst [vmem:[%s7 + $0x10] sm:$0xff] %v519
  %540 = vst [vmem:[%s7 + $0x18] sm:$0xff] %v533
  %541 = vst [vmem:[%s7 + $0x20] sm:$0xff] %v493
  %542 = vst [vmem:[%s7 + $0x28] sm:$0xff] %v507
  %543 = vst [vmem:[%s7 + $0x30] sm:$0xff] %v521
  %544 = vst [vmem:[%s7 + $0x38] sm:$0xff] %v535
  // Predicated region
  $region34: #{bert_lm_prediction_head.1} parent=0 // pred_check
    _
  $region35: #{bert_lm_prediction_head.1} parent=0 // pred_check_branch
    %546 = sbr.rel (0) target = $region37
  $region36: #{bert_lm_prediction_head.1} parent=0 // pred_region
    _
  $region37: #{bert_lm_prediction_head.1} parent=0 // pred_fallthru
    _
  // Predicated region
  $region38: #{bert_lm_prediction_head.1} parent=0 // pred_check
    _
  $region39: #{bert_lm_prediction_head.1} parent=0 // pred_check_branch
    %548 = sbr.rel (0) target = $region41
  $region40: #{bert_lm_prediction_head.1} parent=0 // pred_region
    _
  $region41: #{bert_lm_prediction_head.1} parent=0 // pred_fallthru
    _

</llo_original>
